<compile_context>
chip_gen: v5e
topology: v5e:2x2
jax: 0.10.0
libtpu: 0.0.40
codegen_flags: <defaults>
</compile_context>

<pallas_src>
import math

import jax
import jax.numpy as jnp
from jax.experimental import pallas as pl
from jax.experimental.pallas import tpu as pltpu

HIDDEN = 32        # chatbot.encoder.output_dim
LAYER0 = 50        # layers=[50]
NCLASS = 2

L0_PAD = 128       # hidden layer width padded to a full lane dim
C_PAD = 128        # class logits padded to a full lane dim (compute only)
C_OUT = 8          # lanes actually written back (classes live in lanes 0-1)


def _round_up(x, m):
    return (x + m - 1) // m * m


def _noise_filter_kernel(h_ref, w1_ref, b1_ref, w2_ref, b2_ref, logp_ref):
    """Fused decoder MLP + masked log_softmax over one batch tile.

    h_ref    : (TM, HIDDEN)     bf16  encoder hidden states (flattened rows)
    w1_ref   : (HIDDEN, L0_PAD) bf16  Linear(H,50) weight, transposed + 0-padded
    b1_ref   : (1, L0_PAD)      f32
    w2_ref   : (L0_PAD, C_PAD)  bf16  Linear(50,2) weight, transposed + 0-padded
    b2_ref   : (1, C_PAD)       f32
    logp_ref : (TM, C_OUT)      f32   log_softmax; only lanes [0, NCLASS) valid
    """
    h = h_ref[...]

    # layer 0: Linear(H, 50) -> ReLU   (padded columns stay exactly 0)
    z1 = jnp.dot(h, w1_ref[...], preferred_element_type=jnp.float32)
    z1 = jnp.maximum(z1 + b1_ref[...], 0.0)

    # layer 1: Linear(50, 2) -> ReLU   (PyTorch loop applies ReLU to the last
    # layer as well, before log_softmax).  bf16 feed keeps the MXU native.
    z2 = jnp.dot(z1.astype(jnp.bfloat16), w2_ref[...],
                 preferred_element_type=jnp.float32)
    z2 = jnp.maximum(z2 + b2_ref[...], 0.0)

    # Mask the padded class lanes so they do not contribute to the softmax.
    lane = jax.lax.broadcasted_iota(jnp.int32, z2.shape, dimension=1)
    z2 = jnp.where(lane < NCLASS, z2, -1e30)   # plain Python float, no capture

    # log_softmax over the class axis (dim=1), in f32.
    m = jnp.max(z2, axis=-1, keepdims=True)
    e = jnp.exp(z2 - m)
    lse = jnp.log(jnp.sum(e, axis=-1, keepdims=True)) + m
    logp = z2 - lse

    # Only the first C_OUT lanes are written back (16x less HBM write traffic).
    logp_ref[...] = logp[:, :C_OUT]


def prepare_params(w1, b1, w2, b2):
    """Zero-pad the frozen decoder weights to tile-aligned bf16 layouts (once)."""
    w1p = jnp.zeros((HIDDEN, L0_PAD), jnp.bfloat16).at[:, :LAYER0].set(
        w1.astype(jnp.bfloat16))
    b1p = jnp.zeros((1, L0_PAD), jnp.float32).at[0, :LAYER0].set(b1)
    w2p = jnp.zeros((L0_PAD, C_PAD), jnp.bfloat16).at[:LAYER0, :NCLASS].set(
        w2.astype(jnp.bfloat16))
    b2p = jnp.zeros((1, C_PAD), jnp.float32).at[0, :NCLASS].set(b2)
    return w1p, b1p, w2p, b2p


def noise_filter_forward(hidden, padded_params, *, tile_m=512):
    """hidden: (B, ..., H) batch of encoder hidden states (each was (1,1,H)).

    Returns (predict, log_probas): (B,) int32 class ids and (B, 2) f32 log-probs.
    """
    w1p, b1p, w2p, b2p = padded_params
    B = hidden.shape[0]
    h = hidden.reshape(B, -1).astype(jnp.bfloat16)            # (B, H) bf16

    # 8-aligned batch tile.  Cap at ceil(B/2) so the grid has >= 2 steps when
    # possible (v7x: two TensorCores share the "parallel" grid axis) while a
    # large tile amortizes the ~0.35 us fixed per-step pipeline overhead.
    tm = _round_up(max(1, min(tile_m, pl.cdiv(B, 2))), 8)
    grid_m = pl.cdiv(B, tm)                                   # partial last block OK

    logp8 = pl.pallas_call(
        _noise_filter_kernel,
        out_shape=jax.ShapeDtypeStruct((B, C_OUT), jnp.float32),
        grid_spec=pltpu.PrefetchScalarGridSpec(
            num_scalar_prefetch=0,
            grid=(grid_m,),
            in_specs=[
                pl.BlockSpec((tm, HIDDEN), lambda i: (i, 0)),      # activations
                pl.BlockSpec((HIDDEN, L0_PAD), lambda i: (0, 0)),  # resident W1
                pl.BlockSpec((1, L0_PAD), lambda i: (0, 0)),       # resident b1
                pl.BlockSpec((L0_PAD, C_PAD), lambda i: (0, 0)),   # resident W2
                pl.BlockSpec((1, C_PAD), lambda i: (0, 0)),        # resident b2
            ],
            out_specs=pl.BlockSpec((tm, C_OUT), lambda i: (i, 0)),
        ),
        compiler_params=pltpu.CompilerParams(
            dimension_semantics=("parallel",)),
    )(h, w1p, b1p, w2p, b2p)

    log_probas = logp8[:, :NCLASS]                            # (B, 2)
    # torch.topk(1): first occurrence on ties -> strict '>' picks class 0 on ties.
    predict = (log_probas[:, 1] > log_probas[:, 0]).astype(jnp.int32)
    return predict, log_probas


def _init_linear(key, fan_in, fan_out):
    """Deterministic PyTorch-style nn.Linear init; weight stored as (in, out)."""
    kw, kb = jax.random.split(key)
    bound = 1.0 / math.sqrt(fan_in)
    w = jax.random.uniform(kw, (fan_in, fan_out), jnp.float32, -bound, bound)
    b = jax.random.uniform(kb, (fan_out,), jnp.float32, -bound, bound)
    return w, b


if __name__ == "__main__":
    key = jax.random.PRNGKey(0)
    k_h, k_l0, k_l1 = jax.random.split(key, 3)

    # Synthetic batch of encoder hidden states; each mirrors hidden.view(1,1,-1).
    # B deliberately not a multiple of the tile to exercise the partial-block path.
    B = 200
    hidden = jax.random.normal(k_h, (B, 1, 1, HIDDEN), jnp.float32)

    w1, b1 = _init_linear(k_l0, HIDDEN, LAYER0)
    w2, b2 = _init_linear(k_l1, LAYER0, NCLASS)
    padded = prepare_params(w1, b1, w2, b2)

    predict, log_probas = noise_filter_forward(hidden, padded, tile_m=512)
    jax.block_until_ready((predict, log_probas))

    # Pure-JAX reference check (same bf16 rounding of activations/weights,
    # f32 accumulation, as in the kernel).
    h = hidden.reshape(B, -1)
    hb = h.astype(jnp.bfloat16)
    w1b = w1.astype(jnp.bfloat16)
    w2b = w2.astype(jnp.bfloat16)
    r = jnp.maximum(
        jnp.dot(hb, w1b, preferred_element_type=jnp.float32) + b1, 0.0)
    r = jnp.maximum(
        jnp.dot(r.astype(jnp.bfloat16), w2b,
                preferred_element_type=jnp.float32) + b2, 0.0)
    ref_logp = jax.nn.log_softmax(r, axis=1)
    ref_pred = jnp.argmax(ref_logp, axis=1).astype(jnp.int32)

    assert log_probas.shape == (B, NCLASS)
    assert jnp.allclose(log_probas, ref_logp, atol=1e-4), (log_probas, ref_logp)
    assert jnp.array_equal(predict, ref_pred), (predict, ref_pred)

    print("KERNEL_OK")
</pallas_src>

<mosaic_0001>
module attributes {stable_mosaic.version = 11 : i64} {
  func.func @_noise_filter_kernel(%arg0: i32, %arg1: memref<104x32xbf16, #tpu.memory_space<vmem>>, %arg2: memref<32x128xbf16, #tpu.memory_space<vmem>>, %arg3: memref<1x128xf32, #tpu.memory_space<vmem>>, %arg4: memref<128x128xbf16, #tpu.memory_space<vmem>>, %arg5: memref<1x128xf32, #tpu.memory_space<vmem>>, %arg6: memref<104x8xf32, #tpu.memory_space<vmem>>) attributes {dimension_semantics = [#tpu.dimension_semantics<parallel>], iteration_bounds = array<i64: 2>, scalar_prefetch = 0 : i64, scratch_operands = 0 : i64, tpu.core_type = #tpu.core_type<tc>, window_params = [{transform_indices = @transform_0, window_bounds = array<i64: 104, 32>}, {pipeline_mode = #tpu.pipeline_mode<synchronous>, transform_indices = @transform_1, window_bounds = array<i64: 32, 128>}, {pipeline_mode = #tpu.pipeline_mode<synchronous>, transform_indices = @transform_2, window_bounds = array<i64: 1, 128>}, {pipeline_mode = #tpu.pipeline_mode<synchronous>, transform_indices = @transform_3, window_bounds = array<i64: 128, 128>}, {pipeline_mode = #tpu.pipeline_mode<synchronous>, transform_indices = @transform_4, window_bounds = array<i64: 1, 128>}, {transform_indices = @transform_5, window_bounds = array<i64: 104, 8>}]} {
    %c0 = arith.constant 0 : index
    %c0_0 = arith.constant 0 : index
    %0 = vector.load %arg1[%c0, %c0_0] : memref<104x32xbf16, #tpu.memory_space<vmem>>, vector<104x32xbf16>
    %c0_1 = arith.constant 0 : index
    %c0_2 = arith.constant 0 : index
    %1 = vector.load %arg2[%c0_1, %c0_2] : memref<32x128xbf16, #tpu.memory_space<vmem>>, vector<32x128xbf16>
    %cst = arith.constant dense<0.000000e+00> : vector<104x128xf32>
    %2 = tpu.matmul %0, %1, %cst {dimension_numbers = #tpu.dot_dimension_numbers<[1], [0], [0], [1], [0, 0, 1, 1], [], []>} : vector<104x32xbf16>, vector<32x128xbf16>, vector<104x128xf32> -> vector<104x128xf32>
    %c0_3 = arith.constant 0 : index
    %c0_4 = arith.constant 0 : index
    %3 = vector.load %arg3[%c0_3, %c0_4] : memref<1x128xf32, #tpu.memory_space<vmem>>, vector<1x128xf32>
    %4 = vector.broadcast %3 : vector<1x128xf32> to vector<104x128xf32>
    %5 = arith.addf %2, %4 : vector<104x128xf32>
    %cst_5 = arith.constant 0.000000e+00 : f32
    %6 = vector.broadcast %cst_5 : f32 to vector<104x128xf32>
    %7 = arith.maximumf %5, %6 : vector<104x128xf32>
    %8 = arith.truncf %7 : vector<104x128xf32> to vector<104x128xbf16>
    %c0_6 = arith.constant 0 : index
    %c0_7 = arith.constant 0 : index
    %9 = vector.load %arg4[%c0_6, %c0_7] : memref<128x128xbf16, #tpu.memory_space<vmem>>, vector<128x128xbf16>
    %cst_8 = arith.constant dense<0.000000e+00> : vector<104x128xf32>
    %10 = tpu.matmul %8, %9, %cst_8 {dimension_numbers = #tpu.dot_dimension_numbers<[1], [0], [0], [1], [0, 0, 1, 1], [], []>} : vector<104x128xbf16>, vector<128x128xbf16>, vector<104x128xf32> -> vector<104x128xf32>
    %c0_9 = arith.constant 0 : index
    %c0_10 = arith.constant 0 : index
    %11 = vector.load %arg5[%c0_9, %c0_10] : memref<1x128xf32, #tpu.memory_space<vmem>>, vector<1x128xf32>
    %12 = vector.broadcast %11 : vector<1x128xf32> to vector<104x128xf32>
    %13 = arith.addf %10, %12 : vector<104x128xf32>
    %cst_11 = arith.constant 0.000000e+00 : f32
    %14 = vector.broadcast %cst_11 : f32 to vector<104x128xf32>
    %15 = arith.maximumf %13, %14 : vector<104x128xf32>
    %16 = tpu.iota {dimensions = array<i32: 1>} : vector<104x128xi32>
    %c2_i32 = arith.constant 2 : i32
    %17 = vector.broadcast %c2_i32 : i32 to vector<104x128xi32>
    %18 = arith.cmpi slt, %16, %17 : vector<104x128xi32>
    %cst_12 = arith.constant -1.000000e+30 : f32
    %19 = vector.broadcast %cst_12 : f32 to vector<104x128xf32>
    %20 = arith.select %18, %15, %19 : vector<104x128xi1>, vector<104x128xf32>
    %cst_13 = arith.constant dense<0xFF800000> : vector<104xf32>
    %21 = vector.multi_reduction <maximumf>, %20, %cst_13 [1] : vector<104x128xf32> to vector<104xf32>
    %22 = vector.shape_cast %21 : vector<104xf32> to vector<104x1xf32>
    %23 = vector.broadcast %22 : vector<104x1xf32> to vector<104x128xf32>
    %24 = arith.subf %20, %23 : vector<104x128xf32>
    %25 = math.exp %24 : vector<104x128xf32>
    %cst_14 = arith.constant dense<0.000000e+00> : vector<104xf32>
    %26 = vector.multi_reduction <add>, %25, %cst_14 [1] : vector<104x128xf32> to vector<104xf32>
    %27 = vector.shape_cast %26 : vector<104xf32> to vector<104x1xf32>
    %28 = math.log %27 : vector<104x1xf32>
    %29 = arith.addf %28, %22 : vector<104x1xf32>
    %30 = vector.broadcast %29 : vector<104x1xf32> to vector<104x128xf32>
    %31 = arith.subf %20, %30 : vector<104x128xf32>
    %32 = vector.extract_strided_slice %31 {offsets = [0, 0], sizes = [104, 8], strides = [1, 1]} : vector<104x128xf32> to vector<104x8xf32>
    %c0_15 = arith.constant 0 : index
    %c0_16 = arith.constant 0 : index
    %33 = vector.load %arg6[%c0_15, %c0_16] : memref<104x8xf32, #tpu.memory_space<vmem>>, vector<104x8xf32>
    tpu.vector_store %arg6[%c0_15, %c0_16], %32 {strides = array<i32>} : memref<104x8xf32, #tpu.memory_space<vmem>>, vector<104x8xf32>,
    return
  }
  func.func @transform_0(%arg0: i32) -> (i32, i32) {
    %c0_i32 = arith.constant 0 : i32
    %c0_i32_0 = arith.constant 0 : i32
    return %arg0, %c0_i32 : i32, i32
  }
  func.func @transform_1(%arg0: i32) -> (i32, i32) {
    %c0_i32 = arith.constant 0 : i32
    %c0_i32_0 = arith.constant 0 : i32
    %c0_i32_1 = arith.constant 0 : i32
    return %c0_i32, %c0_i32_0 : i32, i32
  }
  func.func @transform_2(%arg0: i32) -> (i32, i32) {
    %c0_i32 = arith.constant 0 : i32
    %c0_i32_0 = arith.constant 0 : i32
    %c0_i32_1 = arith.constant 0 : i32
    return %c0_i32, %c0_i32_0 : i32, i32
  }
  func.func @transform_3(%arg0: i32) -> (i32, i32) {
    %c0_i32 = arith.constant 0 : i32
    %c0_i32_0 = arith.constant 0 : i32
    %c0_i32_1 = arith.constant 0 : i32
    return %c0_i32, %c0_i32_0 : i32, i32
  }
  func.func @transform_4(%arg0: i32) -> (i32, i32) {
    %c0_i32 = arith.constant 0 : i32
    %c0_i32_0 = arith.constant 0 : i32
    %c0_i32_1 = arith.constant 0 : i32
    return %c0_i32, %c0_i32_0 : i32, i32
  }
  func.func @transform_5(%arg0: i32) -> (i32, i32) {
    %c0_i32 = arith.constant 0 : i32
    %c0_i32_0 = arith.constant 0 : i32
    return %arg0, %c0_i32 : i32, i32
  }
}

</mosaic_0001>

<llo_original>
// kernel: tpu_custom_call.1
$region0: #{tpu_custom_call.1}
  #allocation0 [shape = 'u32[]', space=smem, size = 0x4, offset = 0x4, fixed_abs, tag = 'smem constant byte address 0x4 - core index']
  #allocation1 [shape = 'u32[72,128]{1,0:T(1,128)}', space=vmem, size = 0x9000, scoped, tag = 'internal scratch']
  %s0 = inlined_call_operand.vmem [shape: bf16[200,32], index: 0, kind: input, shape index: {}]
  %s1 = inlined_call_operand.vmem [shape: bf16[32,128], index: 1, kind: input, shape index: {}]
  %s2 = inlined_call_operand.vmem [shape: f32[1,128], index: 2, kind: input, shape index: {}]
  %s3 = inlined_call_operand.vmem [shape: bf16[128,128], index: 3, kind: input, shape index: {}]
  %s4 = inlined_call_operand.vmem [shape: f32[1,128], index: 4, kind: input, shape index: {}]
  %s5 = inlined_call_operand.vmem [shape: f32[200,8], index: 5, kind: output, shape index: {}]
  %s6 = sld [smem:[#allocation0]]
  $region101: #{tpu_custom_call.1} parent=0
    _
  %s8 = ssub.s32 1, %s6
  %s9 = scalar_select 0, %s8, %s6
  $region1: #{tpu_custom_call.1} parent=0
    #allocation2 [shape = 'u8[106496]{0}', space=vmem, size = 0x1a000, scoped, tag = 'output window, operand 0']
    loop: start=0, step=1, limit=4
    $region2: #{tpu_custom_call.1} parent=1 // loop_pre_header
      _
    $region3: #{tpu_custom_call.1} parent=1 // loop_header
      %s11 = sphi 0, %s15
      %p12 = scmp.ge.s32.totalorder %s11, 4
      %s21 = sphi 0, %s23
      %s24 = sphi 0, %s21
      %s25 = sphi 0, %s24
      %s41 = sphi 0, %s25
      %s45 = sphi 0, %s45
      %s47 = sphi 0, %s45
      %s48 = sphi 0, %s47
      %s62 = sphi 0, %s48
      %s66 = sphi 0, %s66
      %s68 = sphi 0, %s66
      %s69 = sphi 0, %s68
      %s83 = sphi 0, %s69
      %s87 = sphi 0, %s87
      %s89 = sphi 0, %s87
      %s90 = sphi 0, %s89
      %s104 = sphi 0, %s90
      %s108 = sphi 0, %s108
      %s110 = sphi 0, %s108
      %s111 = sphi 0, %s110
      %s125 = sphi 0, %s111
      %s131 = sphi 0, %s133
      %s134 = sphi 0, %s131
      %s135 = sphi 0, %s134
      %s151 = sphi 0, %s135
    $region4: #{tpu_custom_call.1} parent=1 // loop_header_branch
      %14 = sbr.rel (%p12) target = $region8
    $region5: #{tpu_custom_call.1} parent=1 // loop_body
      %s16 = ssub.s32 %s11, 1
      %s17 = ssub.s32 %s11, 2
      %s18 = sadd.s32 %s11, 1
      %s19 = ssub.s32 %s11, %s18
      %p20 = scmp.eq.s32.totalorder %s19, 0
      %s22 = sadd.s32 %s21, 1
      %s23 = scalar_select %p20, %s21, %s22
      %p26 = pneg %p20
      %p27 = scmp.eq.s32.totalorder %s11, 1
      %p28 = por %p26, %p27
      %p29 = scmp.ne.s32.totalorder %s21, %s24
      %p30 = scmp.eq.s32.totalorder %s11, 0
      %p31 = por %p29, %p30
      %p32 = scmp.ne.s32.totalorder %s21, %s24
      %p33 = scmp.eq.s32.totalorder %s16, 1
      %p34 = por %p32, %p33
      %p35 = scmp.ne.s32.totalorder %s24, %s25
      %p36 = scmp.eq.s32.totalorder %s16, 0
      %p37 = por %p35, %p36
      %p38 = scmp.ne.s32.totalorder %s24, %s25
      %p39 = scmp.eq.s32.totalorder %s17, 1
      %p40 = por %p38, %p39
      %p42 = scmp.ne.s32.totalorder %s25, %s41
      %p43 = scmp.eq.s32.totalorder %s17, 0
      %p44 = por %p42, %p43
      %s46 = sadd.s32 %s45, 1
      %p49 = scmp.eq.s32.totalorder %s11, 1
      %p50 = scmp.ne.s32.totalorder %s45, %s47
      %p51 = scmp.eq.s32.totalorder %s11, 0
      %p52 = por %p50, %p51
      %p53 = scmp.ne.s32.totalorder %s45, %s47
      %p54 = scmp.eq.s32.totalorder %s16, 1
      %p55 = por %p53, %p54
      %p56 = scmp.ne.s32.totalorder %s47, %s48
      %p57 = scmp.eq.s32.totalorder %s16, 0
      %p58 = por %p56, %p57
      %p59 = scmp.ne.s32.totalorder %s47, %s48
      %p60 = scmp.eq.s32.totalorder %s17, 1
      %p61 = por %p59, %p60
      %p63 = scmp.ne.s32.totalorder %s48, %s62
      %p64 = scmp.eq.s32.totalorder %s17, 0
      %p65 = por %p63, %p64
      %s67 = sadd.s32 %s66, 1
      %p70 = scmp.eq.s32.totalorder %s11, 1
      %p71 = scmp.ne.s32.totalorder %s66, %s68
      %p72 = scmp.eq.s32.totalorder %s11, 0
      %p73 = por %p71, %p72
      %p74 = scmp.ne.s32.totalorder %s66, %s68
      %p75 = scmp.eq.s32.totalorder %s16, 1
      %p76 = por %p74, %p75
      %p77 = scmp.ne.s32.totalorder %s68, %s69
      %p78 = scmp.eq.s32.totalorder %s16, 0
      %p79 = por %p77, %p78
      %p80 = scmp.ne.s32.totalorder %s68, %s69
      %p81 = scmp.eq.s32.totalorder %s17, 1
      %p82 = por %p80, %p81
      %p84 = scmp.ne.s32.totalorder %s69, %s83
      %p85 = scmp.eq.s32.totalorder %s17, 0
      %p86 = por %p84, %p85
      %s88 = sadd.s32 %s87, 1
      %p91 = scmp.eq.s32.totalorder %s11, 1
      %p92 = scmp.ne.s32.totalorder %s87, %s89
      %p93 = scmp.eq.s32.totalorder %s11, 0
      %p94 = por %p92, %p93
      %p95 = scmp.ne.s32.totalorder %s87, %s89
      %p96 = scmp.eq.s32.totalorder %s16, 1
      %p97 = por %p95, %p96
      %p98 = scmp.ne.s32.totalorder %s89, %s90
      %p99 = scmp.eq.s32.totalorder %s16, 0
      %p100 = por %p98, %p99
      %p101 = scmp.ne.s32.totalorder %s89, %s90
      %p102 = scmp.eq.s32.totalorder %s17, 1
      %p103 = por %p101, %p102
      %p105 = scmp.ne.s32.totalorder %s90, %s104
      %p106 = scmp.eq.s32.totalorder %s17, 0
      %p107 = por %p105, %p106
      %s109 = sadd.s32 %s108, 1
      %p112 = scmp.eq.s32.totalorder %s11, 1
      %p113 = scmp.ne.s32.totalorder %s108, %s110
      %p114 = scmp.eq.s32.totalorder %s11, 0
      %p115 = por %p113, %p114
      %p116 = scmp.ne.s32.totalorder %s108, %s110
      %p117 = scmp.eq.s32.totalorder %s16, 1
      %p118 = por %p116, %p117
      %p119 = scmp.ne.s32.totalorder %s110, %s111
      %p120 = scmp.eq.s32.totalorder %s16, 0
      %p121 = por %p119, %p120
      %p122 = scmp.ne.s32.totalorder %s110, %s111
      %p123 = scmp.eq.s32.totalorder %s17, 1
      %p124 = por %p122, %p123
      %p126 = scmp.ne.s32.totalorder %s111, %s125
      %p127 = scmp.eq.s32.totalorder %s17, 0
      %p128 = por %p126, %p127
      %s129 = ssub.s32 %s11, %s18
      %p130 = scmp.eq.s32.totalorder %s129, 0
      %s132 = sadd.s32 %s131, 1
      %s133 = scalar_select %p130, %s131, %s132
      %p136 = pneg %p130
      %p137 = scmp.eq.s32.totalorder %s11, 1
      %p138 = por %p136, %p137
      %p139 = scmp.ne.s32.totalorder %s131, %s134
      %p140 = scmp.eq.s32.totalorder %s11, 0
      %p141 = por %p139, %p140
      %p142 = scmp.ne.s32.totalorder %s131, %s134
      %p143 = scmp.eq.s32.totalorder %s16, 1
      %p144 = por %p142, %p143
      %p145 = scmp.ne.s32.totalorder %s134, %s135
      %p146 = scmp.eq.s32.totalorder %s16, 0
      %p147 = por %p145, %p146
      %p148 = scmp.ne.s32.totalorder %s134, %s135
      %p149 = scmp.eq.s32.totalorder %s17, 1
      %p150 = por %p148, %p149
      %p152 = scmp.ne.s32.totalorder %s135, %s151
      %p153 = scmp.eq.s32.totalorder %s17, 0
      %p154 = por %p152, %p153
      %p155 = scmp.le.s32.totalorder 1, %s11
      %p156 = scmp.lt.s32.totalorder %s11, 3
      %p157 = pnand %p155, %p156
      %p158 = pneg %p157
      // Predicated region
      $region9: #{tpu_custom_call.1} parent=5 // pred_check
        _
      $region10: #{tpu_custom_call.1} parent=5 // pred_check_branch
        %160 = sbr.rel (%p157) target = $region12
      $region11: #{tpu_custom_call.1} parent=5 // pred_region
        %s161 = ssub.s32 %s11, 1
        // Predicated region
        $region13: #{tpu_custom_call.1} parent=11 // pred_check
          %p162 = pneg %p58
        $region14: #{tpu_custom_call.1} parent=11 // pred_check_branch
          %164 = sbr.rel (%p162) target = $region16
        $region15: #{tpu_custom_call.1} parent=11 // pred_region
          _
        $region16: #{tpu_custom_call.1} parent=11 // pred_fallthru
          _
        // Predicated region
        $region17: #{tpu_custom_call.1} parent=11 // pred_check
          %p165 = pneg %p79
        $region18: #{tpu_custom_call.1} parent=11 // pred_check_branch
          %167 = sbr.rel (%p165) target = $region20
        $region19: #{tpu_custom_call.1} parent=11 // pred_region
          _
        $region20: #{tpu_custom_call.1} parent=11 // pred_fallthru
          _
        // Predicated region
        $region21: #{tpu_custom_call.1} parent=11 // pred_check
          %p168 = pneg %p100
        $region22: #{tpu_custom_call.1} parent=11 // pred_check_branch
          %170 = sbr.rel (%p168) target = $region24
        $region23: #{tpu_custom_call.1} parent=11 // pred_region
          _
        $region24: #{tpu_custom_call.1} parent=11 // pred_fallthru
          _
        // Predicated region
        $region25: #{tpu_custom_call.1} parent=11 // pred_check
          %p171 = pneg %p121
        $region26: #{tpu_custom_call.1} parent=11 // pred_check_branch
          %173 = sbr.rel (%p171) target = $region28
        $region27: #{tpu_custom_call.1} parent=11 // pred_region
          _
        $region28: #{tpu_custom_call.1} parent=11 // pred_fallthru
          _
      $region12: #{tpu_custom_call.1} parent=5 // pred_fallthru
        _
      %p174 = scmp.lt.s32.totalorder %s11, 2
      // Predicated region
      $region29: #{tpu_custom_call.1} parent=5 // pred_check
        %p175 = pneg %p174
      $region30: #{tpu_custom_call.1} parent=5 // pred_check_branch
        %177 = sbr.rel (%p175) target = $region32
      $region31: #{tpu_custom_call.1} parent=5 // pred_region
        // Predicated region
        $region33: #{tpu_custom_call.1} parent=31 // pred_check
          %p178 = pneg %p31
        $region34: #{tpu_custom_call.1} parent=31 // pred_check_branch
          %180 = sbr.rel (%p178) target = $region36
        $region35: #{tpu_custom_call.1} parent=31 // pred_region
          %s181 = smul.u32 13, %s11
          %s182 = ssub.s32 25, %s181
          %p183 = scmp.lt.s32.totalorder %s182, 13
          %s184 = scalar_select %p183, %s182, 13
          %s185 = smul.u32 4, %s184
          %p186 = scmp.lt.s32.totalorder %s181, 24
          %s187 = scalar_select %p186, %s181, 24
          %s188 = smul.addr %s187, 4
          %s189 = scalar_lea.vmem %s0, %s188
          %s190 = smul.u32 13, %s11
          %s191 = ssub.s32 25, %s190
          %p192 = scmp.lt.s32.totalorder %s191, 13
          %s193 = scalar_select %p192, %s191, 13
          %s194 = smul.u32 4, %s193
        $region36: #{tpu_custom_call.1} parent=31 // pred_fallthru
          _
      $region32: #{tpu_custom_call.1} parent=5 // pred_fallthru
        _
      %p195 = scmp.le.s32.totalorder 1, %s11
      %p196 = scmp.lt.s32.totalorder %s11, 3
      %p197 = pnand %p195, %p196
      %p198 = pneg %p197
      // Predicated region
      $region37: #{tpu_custom_call.1} parent=5 // pred_check
        _
      $region38: #{tpu_custom_call.1} parent=5 // pred_check_branch
        %200 = sbr.rel (%p197) target = $region40
      $region39: #{tpu_custom_call.1} parent=5 // pred_region
        %s201 = ssub.s32 %s11, 1
        %s202 = smul.u32 13, %s16
        %s203 = ssub.s32 25, %s202
        %p204 = scmp.lt.s32.totalorder %s203, 13
        %s205 = scalar_select %p204, %s203, 13
        %s206 = smul.u32 4, %s205
        %p207 = scmp.lt.s32.totalorder %s202, 24
        %s208 = scalar_select %p207, %s202, 24
        %s209 = smul.addr %s208, 4
        %s210 = scalar_lea.vmem %s0, %s209
        %p211 = pneg %p37
        %p212 = pneg %p34
        %p213 = pneg %p58
        %p214 = pneg %p55
        %p215 = pneg %p79
        %p216 = pneg %p76
        %p217 = pneg %p100
        %p218 = pneg %p97
        %p219 = pneg %p121
        %p220 = pneg %p118
        %p221 = pneg %p147
        %p222 = pneg %p144
        %s223 = sand.u32 %s134, 1
        %s224 = sand.u32 %s134, 1
        %s225 = smul.addr %s224, 104
        %s226 = scalar_lea.vmem [#allocation2], %s225
        %s227 = smul.u32 13, %s16
        %s228 = ssub.s32 25, %s227
        %p229 = scmp.lt.s32.totalorder %s228, 13
        %s230 = scalar_select %p229, %s228, 13
        %s231 = smul.u32 4, %s230
        %p232 = scmp.lt.s32.totalorder %s227, 24
        %s233 = scalar_select %p232, %s227, 24
        %s234 = smul.addr %s233, 4
        %s235 = scalar_lea.vmem %s0, %s234
        %s236 = smul.u32 13, %s16
        %s237 = ssub.s32 25, %s236
        %p238 = scmp.lt.s32.totalorder %s237, 13
        %s239 = scalar_select %p238, %s237, 13
        %s240 = smul.u32 4, %s239
        %s241 = smul.u32 13, %s16
        %s242 = ssub.s32 25, %s241
        %p243 = scmp.lt.s32.totalorder %s242, 13
        %s244 = scalar_select %p243, %s242, 13
        %s245 = smul.u32 8, %s244
        %v247 = vld [vmem:[%s235] sm:$0xf]
        %v248 = vld [vmem:[%s235 + $0x4] sm:$0xf]
        %v249 = vld [vmem:[%s235 + $0x8] sm:$0xf]
        %v250 = vld [vmem:[%s235 + $0xc] sm:$0xf]
        %v251 = vld [vmem:[%s235 + $0x10] sm:$0xf]
        %v252 = vld [vmem:[%s235 + $0x14] sm:$0xf]
        %v253 = vld [vmem:[%s235 + $0x18] sm:$0xf]
        %v254 = vld [vmem:[%s235 + $0x1c] sm:$0xf]
        %v255 = vld [vmem:[%s235 + $0x20] sm:$0xf]
        %v256 = vld [vmem:[%s235 + $0x24] sm:$0xf]
        %v257 = vld [vmem:[%s235 + $0x28] sm:$0xf]
        %v258 = vld [vmem:[%s235 + $0x2c] sm:$0xf]
        %v259 = vld [vmem:[%s235 + $0x30] sm:$0xf]
        %v260 = vld [vmem:[%s1] sm:$0xf]
        %v261 = vld [vmem:[%s1 + $0x4] sm:$0xf]
        %v262 = vld [vmem:[%s1 + $0x8] sm:$0xf]
        %v263 = vld [vmem:[%s1 + $0xc] sm:$0xf]
        %v264 = vld [vmem:[%s2] sm:$0x1]
        %v266 = vperm.slane %v264, 0
        %v281 = vunpack.c.l.b16 %v247
        %v282 = vunpack.c.l.b16 %v248
        %v283 = vunpack.c.l.b16 %v249
        %v284 = vunpack.c.l.b16 %v250
        %v285 = vunpack.c.l.b16 %v251
        %v286 = vunpack.c.l.b16 %v252
        %v287 = vunpack.c.l.b16 %v253
        %v288 = vunpack.c.l.b16 %v254
        %v289 = vunpack.c.l.b16 %v255
        %v290 = vunpack.c.l.b16 %v256
        %v291 = vunpack.c.l.b16 %v257
        %v292 = vunpack.c.l.b16 %v258
        %v293 = vunpack.c.l.b16 %v259
        %v294 = vpack.c.b16 %v282, %v281
        %v295 = vpack.c.b16 %v284, %v283
        %v296 = vpack.c.b16 %v286, %v285
        %v297 = vpack.c.b16 %v288, %v287
        %v298 = vpack.c.b16 %v290, %v289
        %v299 = vpack.c.b16 %v292, %v291
        %v300 = vpack.c.b16 %v293, %v293
        %v305 = vunpack.c.l.b16 %v260
        %v306 = vunpack.c.l.b16 %v261
        %v307 = vunpack.c.l.b16 %v262
        %v308 = vunpack.c.l.b16 %v263
        %v309 = vpack.c.b16 %v306, %v305
        %v310 = vpack.c.b16 %v308, %v307
        %vm313 = vcmask 261120
        %v315 = vsel %vm313, %v294, 0
        %v318 = vsel %vm313, %v295, 0
        %v321 = vsel %vm313, %v296, 0
        %v324 = vsel %vm313, %v297, 0
        %v327 = vsel %vm313, %v298, 0
        %v330 = vsel %vm313, %v299, 0
        %v333 = vsel %vm313, %v300, 0
        %335 = vmatpush.bf16.msra.mxu0 0
        %336 = vmatpush.bf16.msra.mxu0 0
        %337 = vmatpush.bf16.msra.mxu0 0
        %338 = vmatpush.bf16.msra.mxu0 0
        %339 = vmatpush.bf16.msra.mxu0 0
        %340 = vmatpush.bf16.msra.mxu0 0
        %341 = vmatpush.bf16.msra.mxu0 %v310
        %342 = vmatpush.bf16.msra.mxu0 %v309
        %343 = vmatmul.bf16.gmra.mxu0 %v315
        %v344 = vpop.f32.mrf.mxu0
        %v345 = vadd.f32 %v266, %v344
        %v346 = vpop.f32.mrf.mxu0
        %v347 = vadd.f32 %v266, %v346
        %348 = vmatmul.bf16.gmra.mxu0 %v318
        %v349 = vpop.f32.mrf.mxu0
        %v350 = vadd.f32 %v266, %v349
        %v351 = vpop.f32.mrf.mxu0
        %v352 = vadd.f32 %v266, %v351
        %353 = vmatmul.bf16.gmra.mxu0 %v321
        %v354 = vpop.f32.mrf.mxu0
        %v355 = vadd.f32 %v266, %v354
        %v356 = vpop.f32.mrf.mxu0
        %v357 = vadd.f32 %v266, %v356
        %358 = vmatmul.bf16.gmra.mxu0 %v324
        %v359 = vpop.f32.mrf.mxu0
        %v360 = vadd.f32 %v266, %v359
        %v361 = vpop.f32.mrf.mxu0
        %v362 = vadd.f32 %v266, %v361
        %363 = vmatmul.bf16.gmra.mxu0 %v327
        %v364 = vpop.f32.mrf.mxu0
        %v365 = vadd.f32 %v266, %v364
        %v366 = vpop.f32.mrf.mxu0
        %v367 = vadd.f32 %v266, %v366
        %368 = vmatmul.bf16.gmra.mxu0 %v330
        %v369 = vpop.f32.mrf.mxu0
        %v370 = vadd.f32 %v266, %v369
        %v371 = vpop.f32.mrf.mxu0
        %v372 = vadd.f32 %v266, %v371
        %373 = vmatmul.bf16.gmra.mxu0 %v333
        %v374 = vpop.f32.mrf.mxu0
        %v375 = vadd.f32 %v266, %v374
        %v376 = vpop.f32.mrf.mxu0
        %377 = vdwg.mxu0
        %v378 = vmax.f32 %v345, 0.0
        %v379 = vmax.f32 %v347, 0.0
        %v380 = vmax.f32 %v350, 0.0
        %v381 = vmax.f32 %v352, 0.0
        %v382 = vmax.f32 %v355, 0.0
        %v383 = vmax.f32 %v357, 0.0
        %v384 = vmax.f32 %v360, 0.0
        %v385 = vmax.f32 %v362, 0.0
        %v386 = vmax.f32 %v365, 0.0
        %v387 = vmax.f32 %v367, 0.0
        %v388 = vmax.f32 %v370, 0.0
        %v389 = vmax.f32 %v372, 0.0
        %v390 = vmax.f32 %v375, 0.0
        %v391 = vpack.c.bf16 %v379, %v378
        %v392 = vpack.c.bf16 %v381, %v380
        %v393 = vpack.c.bf16 %v383, %v382
        %v394 = vpack.c.bf16 %v385, %v384
        %v395 = vpack.c.bf16 %v387, %v386
        %v396 = vpack.c.bf16 %v389, %v388
        %v397 = vpack.c.bf16 %v390, %v390
        %v398 = vld [vmem:[%s3] sm:$0xf]
        %v399 = vld [vmem:[%s3 + $0x4] sm:$0xf]
        %v400 = vld [vmem:[%s3 + $0x8] sm:$0xf]
        %v401 = vld [vmem:[%s3 + $0xc] sm:$0xf]
        %v402 = vld [vmem:[%s3 + $0x10] sm:$0xf]
        %v403 = vld [vmem:[%s3 + $0x14] sm:$0xf]
        %v404 = vld [vmem:[%s3 + $0x18] sm:$0xf]
        %v405 = vld [vmem:[%s3 + $0x1c] sm:$0xf]
        %v406 = vld [vmem:[%s3 + $0x20] sm:$0xf]
        %v407 = vld [vmem:[%s3 + $0x24] sm:$0xf]
        %v408 = vld [vmem:[%s3 + $0x28] sm:$0xf]
        %v409 = vld [vmem:[%s3 + $0x2c] sm:$0xf]
        %v410 = vld [vmem:[%s3 + $0x30] sm:$0xf]
        %v411 = vld [vmem:[%s3 + $0x34] sm:$0xf]
        %v412 = vld [vmem:[%s3 + $0x38] sm:$0xf]
        %v413 = vld [vmem:[%s3 + $0x3c] sm:$0xf]
        %v414 = vld [vmem:[%s4] sm:$0x1]
        %v416 = vperm.slane %v414, 0
        %v434 = vunpack.c.l.b16 %v398
        %v435 = vunpack.c.l.b16 %v399
        %v436 = vunpack.c.l.b16 %v400
        %v437 = vunpack.c.l.b16 %v401
        %v438 = vunpack.c.l.b16 %v402
        %v439 = vunpack.c.l.b16 %v403
        %v440 = vunpack.c.l.b16 %v404
        %v441 = vunpack.c.l.b16 %v405
        %v442 = vunpack.c.l.b16 %v406
        %v443 = vunpack.c.l.b16 %v407
        %v444 = vunpack.c.l.b16 %v408
        %v445 = vunpack.c.l.b16 %v409
        %v446 = vunpack.c.l.b16 %v410
        %v447 = vunpack.c.l.b16 %v411
        %v448 = vunpack.c.l.b16 %v412
        %v449 = vunpack.c.l.b16 %v413
        %v450 = vpack.c.b16 %v435, %v434
        %v451 = vpack.c.b16 %v437, %v436
        %v452 = vpack.c.b16 %v439, %v438
        %v453 = vpack.c.b16 %v441, %v440
        %v454 = vpack.c.b16 %v443, %v442
        %v455 = vpack.c.b16 %v445, %v444
        %v456 = vpack.c.b16 %v447, %v446
        %v457 = vpack.c.b16 %v449, %v448
        %466 = vmatpush.bf16.msra.mxu0 %v457
        %467 = vmatpush.bf16.msra.mxu0 %v456
        %468 = vmatpush.bf16.msra.mxu0 %v455
        %469 = vmatpush.bf16.msra.mxu0 %v454
        %470 = vmatpush.bf16.msra.mxu0 %v453
        %471 = vmatpush.bf16.msra.mxu0 %v452
        %472 = vmatpush.bf16.msra.mxu0 %v451
        %473 = vmatpush.bf16.msra.mxu0 %v450
        %474 = vmatmul.bf16.gmra.mxu0 %v391
        %v475 = vpop.f32.mrf.mxu0
        %v476 = vadd.f32 %v416, %v475
        %v477 = vpop.f32.mrf.mxu0
        %v478 = vadd.f32 %v416, %v477
        %479 = vmatmul.bf16.gmra.mxu0 %v392
        %v480 = vpop.f32.mrf.mxu0
        %v481 = vadd.f32 %v416, %v480
        %v482 = vpop.f32.mrf.mxu0
        %v483 = vadd.f32 %v416, %v482
        %484 = vmatmul.bf16.gmra.mxu0 %v393
        %v485 = vpop.f32.mrf.mxu0
        %v486 = vadd.f32 %v416, %v485
        %v487 = vpop.f32.mrf.mxu0
        %v488 = vadd.f32 %v416, %v487
        %489 = vmatmul.bf16.gmra.mxu0 %v394
        %v490 = vpop.f32.mrf.mxu0
        %v491 = vadd.f32 %v416, %v490
        %v492 = vpop.f32.mrf.mxu0
        %v493 = vadd.f32 %v416, %v492
        %494 = vmatmul.bf16.gmra.mxu0 %v395
        %v495 = vpop.f32.mrf.mxu0
        %v496 = vadd.f32 %v416, %v495
        %v497 = vpop.f32.mrf.mxu0
        %v498 = vadd.f32 %v416, %v497
        %499 = vmatmul.bf16.gmra.mxu0 %v396
        %v500 = vpop.f32.mrf.mxu0
        %v501 = vadd.f32 %v416, %v500
        %v502 = vpop.f32.mrf.mxu0
        %v503 = vadd.f32 %v416, %v502
        %504 = vmatmul.bf16.gmra.mxu0 %v397
        %v505 = vpop.f32.mrf.mxu0
        %v506 = vadd.f32 %v416, %v505
        %v507 = vpop.f32.mrf.mxu0
        %508 = vdwg.mxu0
        %v509 = vmax.f32 %v476, 0.0
        %v510 = vmax.f32 %v478, 0.0
        %v511 = vmax.f32 %v481, 0.0
        %v512 = vmax.f32 %v483, 0.0
        %v513 = vmax.f32 %v486, 0.0
        %v514 = vmax.f32 %v488, 0.0
        %v515 = vmax.f32 %v491, 0.0
        %v516 = vmax.f32 %v493, 0.0
        %v517 = vmax.f32 %v496, 0.0
        %v518 = vmax.f32 %v498, 0.0
        %v519 = vmax.f32 %v501, 0.0
        %v520 = vmax.f32 %v503, 0.0
        %v521 = vmax.f32 %v506, 0.0
        %v522 = vlaneseq
        %v523 = vand.u32 %v522, 127
        %vm524 = vcmp.lt.s32.totalorder %v523, 2
        %v525 = vsel %vm524, %v509, -1e+30
        %v526 = vsel %vm524, %v510, -1e+30
        %v527 = vsel %vm524, %v511, -1e+30
        %v528 = vsel %vm524, %v512, -1e+30
        %v529 = vsel %vm524, %v513, -1e+30
        %v530 = vsel %vm524, %v514, -1e+30
        %v531 = vsel %vm524, %v515, -1e+30
        %v532 = vsel %vm524, %v516, -1e+30
        %v533 = vsel %vm524, %v517, -1e+30
        %v534 = vsel %vm524, %v518, -1e+30
        %v535 = vsel %vm524, %v519, -1e+30
        %v536 = vsel %vm524, %v520, -1e+30
        %v537 = vsel %vm524, %v521, -1e+30
        %538 = vmax.xlane.f32.xlu0 %v525
        %v539 = vpop.xlane.xlu0 %538
        %540 = vmax.xlane.f32.xlu0 %v526
        %v541 = vpop.xlane.xlu0 %540
        %542 = vmax.xlane.f32.xlu0 %v527
        %v543 = vpop.xlane.xlu0 %542
        %544 = vmax.xlane.f32.xlu0 %v528
        %v545 = vpop.xlane.xlu0 %544
        %546 = vmax.xlane.f32.xlu0 %v529
        %v547 = vpop.xlane.xlu0 %546
        %548 = vmax.xlane.f32.xlu0 %v530
        %v549 = vpop.xlane.xlu0 %548
        %550 = vmax.xlane.f32.xlu0 %v531
        %v551 = vpop.xlane.xlu0 %550
        %552 = vmax.xlane.f32.xlu0 %v532
        %v553 = vpop.xlane.xlu0 %552
        %554 = vmax.xlane.f32.xlu0 %v533
        %v555 = vpop.xlane.xlu0 %554
        %556 = vmax.xlane.f32.xlu0 %v534
        %v557 = vpop.xlane.xlu0 %556
        %558 = vmax.xlane.f32.xlu0 %v535
        %v559 = vpop.xlane.xlu0 %558
        %560 = vmax.xlane.f32.xlu0 %v536
        %v561 = vpop.xlane.xlu0 %560
        %562 = vmax.xlane.f32.xlu0 %v537
        %v563 = vpop.xlane.xlu0 %562
        %v564 = vsub.f32 %v525, %v539
        %v565 = vsub.f32 %v526, %v541
        %v566 = vsub.f32 %v527, %v543
        %v567 = vsub.f32 %v528, %v545
        %v568 = vsub.f32 %v529, %v547
        %v569 = vsub.f32 %v530, %v549
        %v570 = vsub.f32 %v531, %v551
        %v571 = vsub.f32 %v532, %v553
        %v572 = vsub.f32 %v533, %v555
        %v573 = vsub.f32 %v534, %v557
        %v574 = vsub.f32 %v535, %v559
        %v575 = vsub.f32 %v536, %v561
        %v576 = vsub.f32 %v537, %v563
        %v577 = vmul.f32 %v564, 1.442695
        %v578 = vpow.pop %v577
        %v579 = vmul.f32 %v565, 1.442695
        %v580 = vpow.pop %v579
        %v581 = vmul.f32 %v566, 1.442695
        %v582 = vpow.pop %v581
        %v583 = vmul.f32 %v567, 1.442695
        %v584 = vpow.pop %v583
        %v585 = vmul.f32 %v568, 1.442695
        %v586 = vpow.pop %v585
        %v587 = vmul.f32 %v569, 1.442695
        %v588 = vpow.pop %v587
        %v589 = vmul.f32 %v570, 1.442695
        %v590 = vpow.pop %v589
        %v591 = vmul.f32 %v571, 1.442695
        %v592 = vpow.pop %v591
        %v593 = vmul.f32 %v572, 1.442695
        %v594 = vpow.pop %v593
        %v595 = vmul.f32 %v573, 1.442695
        %v596 = vpow.pop %v595
        %v597 = vmul.f32 %v574, 1.442695
        %v598 = vpow.pop %v597
        %v599 = vmul.f32 %v575, 1.442695
        %v600 = vpow.pop %v599
        %v601 = vmul.f32 %v576, 1.442695
        %v602 = vpow.pop %v601
        %603 = vadd.xlane.f32.xlu0 %v578
        %v604 = vpop.xlane.xlu0 %603
        %605 = vadd.xlane.f32.xlu0 %v580
        %v606 = vpop.xlane.xlu0 %605
        %607 = vadd.xlane.f32.xlu0 %v582
        %v608 = vpop.xlane.xlu0 %607
        %609 = vadd.xlane.f32.xlu0 %v584
        %v610 = vpop.xlane.xlu0 %609
        %611 = vadd.xlane.f32.xlu0 %v586
        %v612 = vpop.xlane.xlu0 %611
        %613 = vadd.xlane.f32.xlu0 %v588
        %v614 = vpop.xlane.xlu0 %613
        %615 = vadd.xlane.f32.xlu0 %v590
        %v616 = vpop.xlane.xlu0 %615
        %617 = vadd.xlane.f32.xlu0 %v592
        %v618 = vpop.xlane.xlu0 %617
        %619 = vadd.xlane.f32.xlu0 %v594
        %v620 = vpop.xlane.xlu0 %619
        %621 = vadd.xlane.f32.xlu0 %v596
        %v622 = vpop.xlane.xlu0 %621
        %623 = vadd.xlane.f32.xlu0 %v598
        %v624 = vpop.xlane.xlu0 %623
        %625 = vadd.xlane.f32.xlu0 %v600
        %v626 = vpop.xlane.xlu0 %625
        %627 = vadd.xlane.f32.xlu0 %v602
        %v628 = vpop.xlane.xlu0 %627
        %v629 = vlog2.pop %v604
        %v630 = vmul.f32 %v629, 0.6931472
        %v631 = vlog2.pop %v606
        %v632 = vmul.f32 %v631, 0.6931472
        %v633 = vlog2.pop %v608
        %v634 = vmul.f32 %v633, 0.6931472
        %v635 = vlog2.pop %v610
        %v636 = vmul.f32 %v635, 0.6931472
        %v637 = vlog2.pop %v612
        %v638 = vmul.f32 %v637, 0.6931472
        %v639 = vlog2.pop %v614
        %v640 = vmul.f32 %v639, 0.6931472
        %v641 = vlog2.pop %v616
        %v642 = vmul.f32 %v641, 0.6931472
        %v643 = vlog2.pop %v618
        %v644 = vmul.f32 %v643, 0.6931472
        %v645 = vlog2.pop %v620
        %v646 = vmul.f32 %v645, 0.6931472
        %v647 = vlog2.pop %v622
        %v648 = vmul.f32 %v647, 0.6931472
        %v649 = vlog2.pop %v624
        %v650 = vmul.f32 %v649, 0.6931472
        %v651 = vlog2.pop %v626
        %v652 = vmul.f32 %v651, 0.6931472
        %v653 = vlog2.pop %v628
        %v654 = vmul.f32 %v653, 0.6931472
        %v655 = vadd.f32 %v630, %v539
        %v656 = vadd.f32 %v632, %v541
        %v657 = vadd.f32 %v634, %v543
        %v658 = vadd.f32 %v636, %v545
        %v659 = vadd.f32 %v638, %v547
        %v660 = vadd.f32 %v640, %v549
        %v661 = vadd.f32 %v642, %v551
        %v662 = vadd.f32 %v644, %v553
        %v663 = vadd.f32 %v646, %v555
        %v664 = vadd.f32 %v648, %v557
        %v665 = vadd.f32 %v650, %v559
        %v666 = vadd.f32 %v652, %v561
        %v667 = vadd.f32 %v654, %v563
        %v668 = vsub.f32 %v525, %v655
        %v669 = vsub.f32 %v526, %v656
        %v670 = vsub.f32 %v527, %v657
        %v671 = vsub.f32 %v528, %v658
        %v672 = vsub.f32 %v529, %v659
        %v673 = vsub.f32 %v530, %v660
        %v674 = vsub.f32 %v531, %v661
        %v675 = vsub.f32 %v532, %v662
        %v676 = vsub.f32 %v533, %v663
        %v677 = vsub.f32 %v534, %v664
        %v678 = vsub.f32 %v535, %v665
        %v679 = vsub.f32 %v536, %v666
        %v680 = vsub.f32 %v537, %v667
        %vm681 = vcmask 64512
        %682 = vst.msk [vmem:[%s226] sm:$0xff] %vm681, %v668
        %683 = vst.msk [vmem:[%s226 + $0x8] sm:$0xff] %vm681, %v669
        %684 = vst.msk [vmem:[%s226 + $0x10] sm:$0xff] %vm681, %v670
        %685 = vst.msk [vmem:[%s226 + $0x18] sm:$0xff] %vm681, %v671
        %686 = vst.msk [vmem:[%s226 + $0x20] sm:$0xff] %vm681, %v672
        %687 = vst.msk [vmem:[%s226 + $0x28] sm:$0xff] %vm681, %v673
        %688 = vst.msk [vmem:[%s226 + $0x30] sm:$0xff] %vm681, %v674
        %689 = vst.msk [vmem:[%s226 + $0x38] sm:$0xff] %vm681, %v675
        %690 = vst.msk [vmem:[%s226 + $0x40] sm:$0xff] %vm681, %v676
        %691 = vst.msk [vmem:[%s226 + $0x48] sm:$0xff] %vm681, %v677
        %692 = vst.msk [vmem:[%s226 + $0x50] sm:$0xff] %vm681, %v678
        %693 = vst.msk [vmem:[%s226 + $0x58] sm:$0xff] %vm681, %v679
        %694 = vst.msk [vmem:[%s226 + $0x60] sm:$0xff] %vm681, %v680
        %s695 = sand.u32 %s134, 1
        %s696 = sand.u32 %s134, 1
        %s697 = smul.addr %s696, 104
        %s698 = scalar_lea.vmem [#allocation2], %s697
        // Predicated region
        $region41: #{tpu_custom_call.1} parent=39 // pred_check
          %p699 = pneg %p144
        $region42: #{tpu_custom_call.1} parent=39 // pred_check_branch
          %701 = sbr.rel (%p699) target = $region44
        $region43: #{tpu_custom_call.1} parent=39 // pred_region
          %s702 = smul.u32 13, %s16
          %s703 = ssub.s32 25, %s702
          %p704 = scmp.lt.s32.totalorder %s703, 13
          %s705 = scalar_select %p704, %s703, 13
          %s706 = smul.u32 8, %s705
          %p707 = scmp.ne.s32.totalorder 0, %s706
          %s708 = smul.addr %s702, 8
          %s709 = scalar_lea.vmem %s5, %s708
          // Predicated region
          $region45: #{tpu_custom_call.1} parent=43 // pred_check
            %p710 = pneg %p707
          $region46: #{tpu_custom_call.1} parent=43 // pred_check_branch
            %712 = sbr.rel (%p710) target = $region48
          $region47: #{tpu_custom_call.1} parent=43 // pred_region
            // Predicated region
            $region49: #{tpu_custom_call.1} parent=47 // pred_check
              _
            $region50: #{tpu_custom_call.1} parent=47 // pred_check_branch
              %714 = sbr.rel (0) target = $region52
            $region51: #{tpu_custom_call.1} parent=47 // pred_region
              // Predicated region
              $region71: #{tpu_custom_call.1} parent=51 // pred_check
                _
              $region72: #{tpu_custom_call.1} parent=51 // pred_check_branch
                %789 = sbr.rel (0) target = $region74
              $region73: #{tpu_custom_call.1} parent=51 // pred_region
                %s790 = sdiv.u32.pop %s705, 13
                %s791 = srem.u32.pop %s705, 13
                // While loop
                $region75: #{tpu_custom_call.1} parent=73 // loop_pre_header
                  _
                $region76: #{tpu_custom_call.1} parent=73 // loop_header
                  %s793 = sphi 0, %s795
                  %p794 = scmp.ge.s32.totalorder %s793, %s790
                  %s798 = sphi 0, %s829
                  %s799 = sphi %s698, %s832
                  %s800 = sphi %s709, %s833
                $region77: #{tpu_custom_call.1} parent=73 // loop_header_branch
                  %797 = sbr.rel (%p794) target = $region81
                $region78: #{tpu_custom_call.1} parent=73 // loop_body
                  %v801 = vld [vmem:[%s799] sm:$0xff]
                  %802 = vst [vmem:[%s800] sm:$0xff] %v801
                  %v803 = vld [vmem:[%s799 + $0x8] sm:$0xff]
                  %804 = vst [vmem:[%s800 + $0x8] sm:$0xff] %v803
                  %v805 = vld [vmem:[%s799 + $0x10] sm:$0xff]
                  %806 = vst [vmem:[%s800 + $0x10] sm:$0xff] %v805
                  %v807 = vld [vmem:[%s799 + $0x18] sm:$0xff]
                  %808 = vst [vmem:[%s800 + $0x18] sm:$0xff] %v807
                  %v809 = vld [vmem:[%s799 + $0x20] sm:$0xff]
                  %810 = vst [vmem:[%s800 + $0x20] sm:$0xff] %v809
                  %v811 = vld [vmem:[%s799 + $0x28] sm:$0xff]
                  %812 = vst [vmem:[%s800 + $0x28] sm:$0xff] %v811
                  %v813 = vld [vmem:[%s799 + $0x30] sm:$0xff]
                  %814 = vst [vmem:[%s800 + $0x30] sm:$0xff] %v813
                  %v815 = vld [vmem:[%s799 + $0x38] sm:$0xff]
                  %816 = vst [vmem:[%s800 + $0x38] sm:$0xff] %v815
                  %v817 = vld [vmem:[%s799 + $0x40] sm:$0xff]
                  %818 = vst [vmem:[%s800 + $0x40] sm:$0xff] %v817
                  %v819 = vld [vmem:[%s799 + $0x48] sm:$0xff]
                  %820 = vst [vmem:[%s800 + $0x48] sm:$0xff] %v819
                  %v821 = vld [vmem:[%s799 + $0x50] sm:$0xff]
                  %822 = vst [vmem:[%s800 + $0x50] sm:$0xff] %v821
                  %v823 = vld [vmem:[%s799 + $0x58] sm:$0xff]
                  %824 = vst [vmem:[%s800 + $0x58] sm:$0xff] %v823
                  %v825 = vld [vmem:[%s799 + $0x60] sm:$0xff]
                  %826 = vst [vmem:[%s800 + $0x60] sm:$0xff] %v825
                  %s827 = sadd.s32 1, %s798
                  %p828 = scmp.ge.s32.totalorder %s827, %s790
                  %s829 = scalar_select %p828, 0, %s827
                  %s830 = smul.u32 %s829, 104
                  %s831 = smul.u32 %s829, 104
                  %s832 = scalar_lea.vmem %s698, %s830 [#allocation2]
                  %s833 = scalar_lea.vmem %s709, %s831
                $region79: #{tpu_custom_call.1} parent=73 // loop_footer
                  %s795 = sadd.s32 %s793, 1
                $region80: #{tpu_custom_call.1} parent=73 // loop_footer_branch
                  %792 = sbr.rel target = $region76
                $region81: #{tpu_custom_call.1} parent=73 // loop_exit
                  _
                %s834 = sdiv.u32.pop %s705, 13
                %s835 = srem.u32.pop %s705, 13
                %s836 = smul.u32 %s834, 13
                %s837 = smul.u32 8, %s836
                %s838 = scalar_lea.vmem %s698, %s837 [#allocation2]
                %s839 = smul.u32 8, %s836
                %s840 = scalar_lea.vmem %s709, %s839
                // While loop
                $region82: #{tpu_custom_call.1} parent=73 // loop_pre_header
                  _
                $region83: #{tpu_custom_call.1} parent=73 // loop_header
                  %s842 = sphi 0, %s844
                  %p843 = scmp.ge.s32.totalorder %s842, %s835
                  %s847 = sphi 0, %s854
                  %s848 = sphi %s838, %s857
                  %s849 = sphi %s840, %s858
                $region84: #{tpu_custom_call.1} parent=73 // loop_header_branch
                  %846 = sbr.rel (%p843) target = $region88
                $region85: #{tpu_custom_call.1} parent=73 // loop_body
                  %v850 = vld [vmem:[%s848] sm:$0xff]
                  %851 = vst [vmem:[%s849] sm:$0xff] %v850
                  %s852 = sadd.s32 1, %s847
                  %p853 = scmp.ge.s32.totalorder %s852, %s835
                  %s854 = scalar_select %p853, 0, %s852
                  %s855 = smul.u32 %s854, 8
                  %s856 = smul.u32 %s854, 8
                  %s857 = scalar_lea.vmem %s838, %s855 [#allocation2]
                  %s858 = scalar_lea.vmem %s840, %s856
                $region86: #{tpu_custom_call.1} parent=73 // loop_footer
                  %s844 = sadd.s32 %s842, 1
                $region87: #{tpu_custom_call.1} parent=73 // loop_footer_branch
                  %841 = sbr.rel target = $region83
                $region88: #{tpu_custom_call.1} parent=73 // loop_exit
                  _
              $region74: #{tpu_custom_call.1} parent=51 // pred_fallthru
                _
              // Predicated region
              $region89: #{tpu_custom_call.1} parent=51 // pred_check
                _
              $region90: #{tpu_custom_call.1} parent=51 // pred_check_branch
                %860 = sbr.rel target = $region92
              $region91: #{tpu_custom_call.1} parent=51 // pred_region
                _
              $region92: #{tpu_custom_call.1} parent=51 // pred_fallthru
                _
            $region52: #{tpu_custom_call.1} parent=47 // pred_fallthru
              _
            // Predicated region
            $region53: #{tpu_custom_call.1} parent=47 // pred_check
              _
            $region54: #{tpu_custom_call.1} parent=47 // pred_check_branch
              %716 = sbr.rel target = $region56
            $region55: #{tpu_custom_call.1} parent=47 // pred_region
              %s718 = ssub.s32 256, 1
              %s719 = sdiv.u32.pop %s705, 13
              %s720 = srem.u32.pop %s705, 13
              // While loop
              $region57: #{tpu_custom_call.1} parent=55 // loop_pre_header
                _
              $region58: #{tpu_custom_call.1} parent=55 // loop_header
                %s722 = sphi 0, %s724
                %p723 = scmp.ge.s32.totalorder %s722, %s719
                %s727 = sphi 0, %s758
                %s728 = sphi %s698, %s761
                %s729 = sphi %s709, %s762
              $region59: #{tpu_custom_call.1} parent=55 // loop_header_branch
                %726 = sbr.rel (%p723) target = $region63
              $region60: #{tpu_custom_call.1} parent=55 // loop_body
                %v730 = vld [vmem:[%s728] sm:%s718]
                %731 = vst [vmem:[%s729] sm:%s718] %v730
                %v732 = vld [vmem:[%s728 + $0x8] sm:%s718]
                %733 = vst [vmem:[%s729 + $0x8] sm:%s718] %v732
                %v734 = vld [vmem:[%s728 + $0x10] sm:%s718]
                %735 = vst [vmem:[%s729 + $0x10] sm:%s718] %v734
                %v736 = vld [vmem:[%s728 + $0x18] sm:%s718]
                %737 = vst [vmem:[%s729 + $0x18] sm:%s718] %v736
                %v738 = vld [vmem:[%s728 + $0x20] sm:%s718]
                %739 = vst [vmem:[%s729 + $0x20] sm:%s718] %v738
                %v740 = vld [vmem:[%s728 + $0x28] sm:%s718]
                %741 = vst [vmem:[%s729 + $0x28] sm:%s718] %v740
                %v742 = vld [vmem:[%s728 + $0x30] sm:%s718]
                %743 = vst [vmem:[%s729 + $0x30] sm:%s718] %v742
                %v744 = vld [vmem:[%s728 + $0x38] sm:%s718]
                %745 = vst [vmem:[%s729 + $0x38] sm:%s718] %v744
                %v746 = vld [vmem:[%s728 + $0x40] sm:%s718]
                %747 = vst [vmem:[%s729 + $0x40] sm:%s718] %v746
                %v748 = vld [vmem:[%s728 + $0x48] sm:%s718]
                %749 = vst [vmem:[%s729 + $0x48] sm:%s718] %v748
                %v750 = vld [vmem:[%s728 + $0x50] sm:%s718]
                %751 = vst [vmem:[%s729 + $0x50] sm:%s718] %v750
                %v752 = vld [vmem:[%s728 + $0x58] sm:%s718]
                %753 = vst [vmem:[%s729 + $0x58] sm:%s718] %v752
                %v754 = vld [vmem:[%s728 + $0x60] sm:%s718]
                %755 = vst [vmem:[%s729 + $0x60] sm:%s718] %v754
                %s756 = sadd.s32 1, %s727
                %p757 = scmp.ge.s32.totalorder %s756, %s719
                %s758 = scalar_select %p757, 0, %s756
                %s759 = smul.u32 %s758, 104
                %s760 = smul.u32 %s758, 104
                %s761 = scalar_lea.vmem %s698, %s759 [#allocation2]
                %s762 = scalar_lea.vmem %s709, %s760
              $region61: #{tpu_custom_call.1} parent=55 // loop_footer
                %s724 = sadd.s32 %s722, 1
              $region62: #{tpu_custom_call.1} parent=55 // loop_footer_branch
                %721 = sbr.rel target = $region58
              $region63: #{tpu_custom_call.1} parent=55 // loop_exit
                _
              %s763 = sdiv.u32.pop %s705, 13
              %s764 = srem.u32.pop %s705, 13
              %s765 = smul.u32 %s763, 13
              %s766 = smul.u32 8, %s765
              %s767 = scalar_lea.vmem %s698, %s766 [#allocation2]
              %s768 = smul.u32 8, %s765
              %s769 = scalar_lea.vmem %s709, %s768
              // While loop
              $region64: #{tpu_custom_call.1} parent=55 // loop_pre_header
                _
              $region65: #{tpu_custom_call.1} parent=55 // loop_header
                %s771 = sphi 0, %s773
                %p772 = scmp.ge.s32.totalorder %s771, %s764
                %s776 = sphi 0, %s783
                %s777 = sphi %s767, %s786
                %s778 = sphi %s769, %s787
              $region66: #{tpu_custom_call.1} parent=55 // loop_header_branch
                %775 = sbr.rel (%p772) target = $region70
              $region67: #{tpu_custom_call.1} parent=55 // loop_body
                %v779 = vld [vmem:[%s777] sm:%s718]
                %780 = vst [vmem:[%s778] sm:%s718] %v779
                %s781 = sadd.s32 1, %s776
                %p782 = scmp.ge.s32.totalorder %s781, %s764
                %s783 = scalar_select %p782, 0, %s781
                %s784 = smul.u32 %s783, 8
                %s785 = smul.u32 %s783, 8
                %s786 = scalar_lea.vmem %s767, %s784 [#allocation2]
                %s787 = scalar_lea.vmem %s769, %s785
              $region68: #{tpu_custom_call.1} parent=55 // loop_footer
                %s773 = sadd.s32 %s771, 1
              $region69: #{tpu_custom_call.1} parent=55 // loop_footer_branch
                %770 = sbr.rel target = $region65
              $region70: #{tpu_custom_call.1} parent=55 // loop_exit
                _
            $region56: #{tpu_custom_call.1} parent=47 // pred_fallthru
              _
          $region48: #{tpu_custom_call.1} parent=43 // pred_fallthru
            _
          %861 = vnop
        $region44: #{tpu_custom_call.1} parent=39 // pred_fallthru
          _
      $region40: #{tpu_custom_call.1} parent=5 // pred_fallthru
        _
      %p862 = scmp.le.s32.totalorder 2, %s11
      // Predicated region
      $region93: #{tpu_custom_call.1} parent=5 // pred_check
        %p863 = pneg %p862
      $region94: #{tpu_custom_call.1} parent=5 // pred_check_branch
        %865 = sbr.rel (%p863) target = $region96
      $region95: #{tpu_custom_call.1} parent=5 // pred_region
        %s866 = ssub.s32 %s11, 2
        // Predicated region
        $region97: #{tpu_custom_call.1} parent=95 // pred_check
          %p867 = pneg %p150
        $region98: #{tpu_custom_call.1} parent=95 // pred_check_branch
          %869 = sbr.rel (%p867) target = $region100
        $region99: #{tpu_custom_call.1} parent=95 // pred_region
          %s870 = sand.u32 %s135, 1
          %s871 = sand.u32 %s135, 1
          %s872 = smul.addr %s871, 104
          %s873 = scalar_lea.vmem [#allocation2], %s872
        $region100: #{tpu_custom_call.1} parent=95 // pred_fallthru
          _
      $region96: #{tpu_custom_call.1} parent=5 // pred_fallthru
        _
    $region6: #{tpu_custom_call.1} parent=1 // loop_footer
      %s15 = sadd.s32 1, %s11
    $region7: #{tpu_custom_call.1} parent=1 // loop_footer_branch
      %10 = sbr.rel target = $region3
    $region8: #{tpu_custom_call.1} parent=1 // loop_exit
      _

</llo_original>
